<compile_context>
chip_gen: v7x
topology: tpu7x:2x2x1
jax: 0.10.0
libtpu: 0.0.40
codegen_flags: <defaults>
</compile_context>

<pallas_src>
import jax
import jax.numpy as jnp
from jax import lax
from jax.experimental import pallas as pl
from jax.experimental.pallas import tpu as pltpu


# --------------------------------------------------------------------------------------
# Fused kernel:
#   values[b, vt] = log1p(relu( max_s( hidden[b,s] @ W[:,vt] + pen[b,s] ) + bias[vt] ))
# --------------------------------------------------------------------------------------
def _make_splade_kernel(seq_len, cb, sc):
    """cb = batch rows per inner chunk, sc = seq positions per inner chunk.
    Either cb == 1 (chunk within a sequence) or sc == seq_len (chunk whole rows), so
    each chunk is `cb * sc` *contiguous* rows of the flattened (B*S, H) hidden."""
    n_sc = seq_len // sc
    rows = cb * sc
    aligned = ((cb * seq_len) % 8 == 0) and (sc % 8 == 0 or n_sc == 1)

    def kernel(hidden_ref, w_ref, bias_ref, pen_ref, values_ref):
        # hidden: (tb*S, H) bf16 | w: (1, H, tv) bf16 | bias: (1, tv) f32
        # pen:    (tb*S, 1) f32  | values: (tb, tv) f32
        tb, tv = values_ref.shape
        n_bg = tb // cb

        def bg_body(g, carry):
            def sc_body(c, run_max):
                start = g * (cb * seq_len) + c * sc
                if aligned:
                    start = pl.multiple_of(start, 8)
                h = hidden_ref[pl.ds(start, rows), :]                 # (rows, H) bf16
                pen = pen_ref[pl.ds(start, rows), :]                  # (rows, 1) f32
                # MXU matmul, f32 accumulation; masked rows pushed to ~-1e30.
                logits = jnp.dot(h, w_ref[0],
                                 preferred_element_type=jnp.float32) + pen
                cmax = jnp.max(logits.reshape(cb, sc, tv), axis=1)    # seq reduce
                return jnp.maximum(run_max, cmax)

            m = lax.fori_loop(0, n_sc, sc_body,
                              jnp.full((cb, tv), -jnp.inf, jnp.float32))
            # Bias is constant along the reduced seq axis -> add after the max.
            m = m + bias_ref[...]
            # log1p∘relu is monotone and maps <=0 to 0 -> hoisting past the max is exact.
            out = jnp.log1p(jnp.maximum(m, 0.0)).astype(values_ref.dtype)
            ostart = g * cb
            if cb % 8 == 0:
                ostart = pl.multiple_of(ostart, 8)
            values_ref[pl.ds(ostart, cb), :] = out
            return carry

        lax.fori_loop(0, n_bg, bg_body, 0)

    return kernel


# --------------------------------------------------------------------------------------
# Wrapper-side tiling helpers
# --------------------------------------------------------------------------------------
def _choose_chunks(seq_len, tb, target_rows=512):
    """Pick (cb, sc): rows-per-chunk = cb*sc, capping the f32 logits intermediate."""
    if seq_len > target_rows:
        sc = seq_len
        for cand in range(target_rows, 7, -8):       # multiple-of-8 divisor of S
            if seq_len % cand == 0:
                sc = cand
                break
        return 1, sc
    cb = 1
    for cand in range(tb, 0, -1):                    # largest divisor of tb that fits
        if tb % cand == 0 and cand * seq_len <= target_rows:
            cb = cand
            break
    return cb, seq_len


def _vmem_need_bytes(tb, S, H, tv, cb, sc):
    hid = tb * S * H * 2           # bf16 hidden block
    w = H * tv * 2                 # bf16 W block
    b = tv * 4
    pen = tb * S * 4
    out = tb * tv * 4
    inter = 2 * cb * sc * tv * 4 + 2 * cb * tv * 4   # logits chunk + running max
    return 2 * (hid + w + b + pen + out) + inter     # x2: double buffering


def prepare_splade_head(w, b, *, tv=512, mxu_dtype=jnp.bfloat16):
    """One-time prep of the MLM head: pad vocab to a multiple of tv, cast to bf16 and
    lay W out tile-major (nv, H, tv) so each kernel block is a single contiguous DMA."""
    H, V = w.shape
    nv = pl.cdiv(V, tv)
    Vp = nv * tv
    if Vp != V:
        w = jnp.pad(w, ((0, 0), (0, Vp - V)))
        b = jnp.pad(b, (0, Vp - V))
    w_tiles = jnp.transpose(w.reshape(H, nv, tv), (1, 0, 2)).astype(mxu_dtype)
    bias = b.reshape(1, Vp).astype(jnp.float32)
    return w_tiles, bias, V


def splade_values(hidden, attention_mask, head, *, tb=None):
    """values[b, v] = max_s( log1p(relu((hidden @ W + bias)[b, s, v])) * mask[b, s] )."""
    w_tiles, bias, vocab_size = head
    nv, H, tv = w_tiles.shape
    Vp = nv * tv
    B, S, Hh = hidden.shape
    assert Hh == H

    # Pad batch to a multiple of 8 sublanes (padded rows are fully masked -> zeros).
    Bp = pl.cdiv(B, 8) * 8
    hid = hidden.astype(w_tiles.dtype)
    mask = attention_mask.astype(jnp.float32)
    if Bp != B:
        hid = jnp.pad(hid, ((0, Bp - B), (0, 0), (0, 0)))
        mask = jnp.pad(mask, ((0, Bp - B), (0, 0)))
    hid2 = hid.reshape(Bp * S, H)
    # Additive penalty: 0 where kept, -1e30 where masked (binary {0,1} masks).
    pen = ((mask - 1.0) * jnp.float32(1e30)).reshape(Bp * S, 1)

    # VMEM budget (v5e/v6e: 128 MiB, v7x: 64 MiB); shrink tb until blocks fit.
    try:
        vmem_cap = int(pltpu.get_tpu_info().vmem_capacity_bytes)
    except Exception:
        vmem_cap = 64 * 2**20
    budget = int(vmem_cap * 0.8)

    if tb is None:
        tb = Bp                                   # nb = 1 -> W streamed from HBM once
    tb_cands = [d for d in range(tb, 7, -8) if Bp % d == 0] or [Bp]
    chosen = None
    for cand in tb_cands:
        cb, sc = _choose_chunks(S, cand)
        if _vmem_need_bytes(cand, S, H, tv, cb, sc) <= budget:
            chosen = (cand, cb, sc)
            break
    if chosen is None:
        cand = tb_cands[-1]
        cb, sc = _choose_chunks(S, cand)
        chosen = (cand, cb, sc)
    tb, cb, sc = chosen

    nb = Bp // tb
    need = _vmem_need_bytes(tb, S, H, tv, cb, sc)
    vmem_limit = int(min(max(need + (8 << 20), 32 << 20), budget))
    if vmem_limit < need:
        vmem_limit = int(need + (4 << 20))

    cost = pl.CostEstimate(
        flops=2 * Bp * S * H * Vp,
        transcendentals=Bp * Vp,                  # one log1p per output element
        bytes_accessed=(Bp * S * H * hid2.dtype.itemsize
                        + nb * H * Vp * w_tiles.dtype.itemsize
                        + Vp * 4 + Bp * S * 4 + Bp * Vp * 4),
    )

    values = pl.pallas_call(
        _make_splade_kernel(S, cb, sc),
        out_shape=jax.ShapeDtypeStruct((Bp, Vp), jnp.float32),
        grid_spec=pltpu.PrefetchScalarGridSpec(
            num_scalar_prefetch=0,
            grid=(nb, nv),                                            # vocab innermost
            in_specs=[
                pl.BlockSpec((tb * S, H), lambda bi, vi: (bi, 0)),    # hidden (resident)
                pl.BlockSpec((1, H, tv), lambda bi, vi: (vi, 0, 0)),  # W, tile-major
                pl.BlockSpec((1, tv), lambda bi, vi: (0, vi)),        # bias
                pl.BlockSpec((tb * S, 1), lambda bi, vi: (bi, 0)),    # mask penalty
            ],
            out_specs=pl.BlockSpec((tb, tv), lambda bi, vi: (bi, vi)),
        ),
        compiler_params=pltpu.CompilerParams(
            # Batch sequential, vocab parallel: a megacore split (v7x) lands on vocab,
            # so each core streams a disjoint half of W.
            dimension_semantics=("arbitrary", "parallel"),
            vmem_limit_bytes=vmem_limit,
        ),
        cost_estimate=cost,
    )(hid2, w_tiles, bias, pen)

    return values[:B, :vocab_size]


# --------------------------------------------------------------------------------------
# Tiny deterministic "transformer_model" stand-in + SPLADE forward / reference
# --------------------------------------------------------------------------------------
def init_params(key, vocab_size, hidden):
    k1, k2, k3 = jax.random.split(key, 3)
    embed = jax.random.normal(k1, (vocab_size, hidden), jnp.float32)
    w_out = jax.random.normal(k2, (hidden, vocab_size), jnp.float32) / jnp.sqrt(hidden)
    b_out = 0.1 * jax.random.normal(k3, (vocab_size,), jnp.float32)
    return embed, w_out, b_out


def splade_forward(embed, head, input_ids, attention_mask, top_k):
    # TODO(synk): the real transformer body is external; stand-in = embedding gather + tanh.
    hidden = jnp.tanh(embed[input_ids]).astype(jnp.bfloat16)      # emit bf16 directly
    values = splade_values(hidden, attention_mask, head)          # (B, V) f32
    # TODO(synk): top-k selection/sort has no clean Pallas TPU equivalent; plain JAX.
    top_values = lax.top_k(values, top_k)[0]
    threshold = top_values[:, -1:]
    return values * (values >= threshold).astype(values.dtype)


def splade_reference(embed, w_out, b_out, input_ids, attention_mask, top_k,
                     mxu_dtype=jnp.bfloat16):
    B, S = input_ids.shape
    hidden = jnp.tanh(embed[input_ids]).astype(mxu_dtype)
    logits = jnp.dot(hidden.reshape(B * S, -1), w_out.astype(mxu_dtype),
                     preferred_element_type=jnp.float32).reshape(B, S, -1) + b_out
    act = jnp.log1p(jnp.maximum(logits, 0.0)) * attention_mask[..., None].astype(jnp.float32)
    values = jnp.max(act, axis=1)
    threshold = lax.top_k(values, top_k)[0][:, -1:]
    return values * (values >= threshold).astype(values.dtype)


if __name__ == "__main__":
    # Ragged vocab (not a multiple of 128) + batch not a multiple of 8 exercise padding.
    B, S, H, V = 4, 16, 64, 1000
    TOP_K = 128

    key = jax.random.PRNGKey(0)
    kp, ki, km = jax.random.split(key, 3)
    embed, w_out, b_out = init_params(kp, V, H)
    head = prepare_splade_head(w_out, b_out, tv=512)   # one-time: pad + bf16 + tile-major

    input_ids = jax.random.randint(ki, (B, S), 0, V, dtype=jnp.int32)
    attention_mask = (jax.random.uniform(km, (B, S)) > 0.25).astype(jnp.float32)

    out = splade_forward(embed, head, input_ids, attention_mask, TOP_K)
    out = jax.block_until_ready(out)

    ref = splade_reference(embed, w_out, b_out, input_ids, attention_mask, TOP_K)
    assert out.shape == (B, V)
    assert jnp.allclose(out, ref, atol=1e-4, rtol=1e-4), "mismatch vs reference"

    print("KERNEL_OK")
</pallas_src>

<mosaic_0001>
module attributes {stable_mosaic.version = 11 : i64} {
  func.func @kernel(%arg0: i32, %arg1: i32, %arg2: memref<128x64xbf16, #tpu.memory_space<vmem>>, %arg3: memref<1x64x512xbf16, #tpu.memory_space<vmem>>, %arg4: memref<1x512xf32, #tpu.memory_space<vmem>>, %arg5: memref<128x1xf32, #tpu.memory_space<vmem>>, %arg6: memref<8x512xf32, #tpu.memory_space<vmem>>) attributes {dimension_semantics = [#tpu.dimension_semantics<arbitrary>, #tpu.dimension_semantics<parallel>], iteration_bounds = array<i64: 1, 2>, scalar_prefetch = 0 : i64, scratch_operands = 0 : i64, tpu.core_type = #tpu.core_type<tc>, window_params = [{transform_indices = @transform_0, window_bounds = array<i64: 128, 64>}, {transform_indices = @transform_1, window_bounds = array<i64: 1, 64, 512>}, {transform_indices = @transform_2, window_bounds = array<i64: 1, 512>}, {transform_indices = @transform_3, window_bounds = array<i64: 128, 1>}, {transform_indices = @transform_4, window_bounds = array<i64: 8, 512>}]} {
    %c0_i32 = arith.constant 0 : i32
    %cst = arith.constant 0xFF800000 : f32
    %0 = vector.broadcast %cst : f32 to vector<8x512xf32>
    %c0_i32_0 = arith.constant 0 : i32
    %c128_i32 = arith.constant 128 : i32
    %1 = arith.muli %c0_i32, %c128_i32 : i32
    %c16_i32 = arith.constant 16 : i32
    %2 = arith.muli %c0_i32_0, %c16_i32 : i32
    %3 = arith.addi %1, %2 : i32
    %4 = tpu.assume_multiple %3, 8 : i32
    %5 = arith.index_cast %4 : i32 to index
    %c0 = arith.constant 0 : index
    %6 = vector.load %arg2[%5, %c0] : memref<128x64xbf16, #tpu.memory_space<vmem>>, vector<128x64xbf16>
    %7 = arith.index_cast %4 : i32 to index
    %c0_1 = arith.constant 0 : index
    %8 = vector.load %arg5[%7, %c0_1] : memref<128x1xf32, #tpu.memory_space<vmem>>, vector<128x1xf32>
    %c0_2 = arith.constant 0 : index
    %c0_3 = arith.constant 0 : index
    %c0_4 = arith.constant 0 : index
    %9 = vector.load %arg3[%c0_2, %c0_3, %c0_4] : memref<1x64x512xbf16, #tpu.memory_space<vmem>>, vector<1x64x512xbf16>
    %10 = vector.shape_cast %9 : vector<1x64x512xbf16> to vector<64x512xbf16>
    %cst_5 = arith.constant dense<0.000000e+00> : vector<128x512xf32>
    %11 = tpu.matmul %6, %10, %cst_5 {dimension_numbers = #tpu.dot_dimension_numbers<[1], [0], [0], [1], [0, 0, 1, 1], [], []>} : vector<128x64xbf16>, vector<64x512xbf16>, vector<128x512xf32> -> vector<128x512xf32>
    %12 = vector.broadcast %8 : vector<128x1xf32> to vector<128x512xf32>
    %13 = arith.addf %11, %12 : vector<128x512xf32>
    %14 = vector.shape_cast %13 : vector<128x512xf32> to vector<8x16x512xf32>
    %cst_6 = arith.constant dense<0xFF800000> : vector<8x512xf32>
    %15 = vector.multi_reduction <maximumf>, %14, %cst_6 [1] : vector<8x16x512xf32> to vector<8x512xf32>
    %16 = arith.maximumf %0, %15 : vector<8x512xf32>
    %c1_i32 = arith.constant 1 : i32
    %c0_7 = arith.constant 0 : index
    %c0_8 = arith.constant 0 : index
    %17 = vector.load %arg4[%c0_7, %c0_8] : memref<1x512xf32, #tpu.memory_space<vmem>>, vector<1x512xf32>
    %18 = vector.broadcast %17 : vector<1x512xf32> to vector<8x512xf32>
    %19 = arith.addf %16, %18 : vector<8x512xf32>
    %cst_9 = arith.constant 0.000000e+00 : f32
    %20 = vector.broadcast %cst_9 : f32 to vector<8x512xf32>
    %21 = arith.maximumf %19, %20 : vector<8x512xf32>
    %22 = math.log1p %21 : vector<8x512xf32>
    %c8_i32 = arith.constant 8 : i32
    %23 = arith.muli %c0_i32, %c8_i32 : i32
    %24 = tpu.assume_multiple %23, 8 : i32
    %25 = arith.index_cast %24 : i32 to index
    %c0_10 = arith.constant 0 : index
    %26 = vector.load %arg6[%25, %c0_10] : memref<8x512xf32, #tpu.memory_space<vmem>>, vector<8x512xf32>
    tpu.vector_store %arg6[%25, %c0_10], %22 {strides = array<i32>} : memref<8x512xf32, #tpu.memory_space<vmem>>, vector<8x512xf32>,
    %c1_i32_11 = arith.constant 1 : i32
    return
  }
  func.func @transform_0(%arg0: i32, %arg1: i32) -> (i32, i32) {
    %c0_i32 = arith.constant 0 : i32
    %c0_i32_0 = arith.constant 0 : i32
    return %arg0, %c0_i32 : i32, i32
  }
  func.func @transform_1(%arg0: i32, %arg1: i32) -> (i32, i32, i32) {
    %c0_i32 = arith.constant 0 : i32
    %c0_i32_0 = arith.constant 0 : i32
    %c0_i32_1 = arith.constant 0 : i32
    return %arg1, %c0_i32, %c0_i32_0 : i32, i32, i32
  }
  func.func @transform_2(%arg0: i32, %arg1: i32) -> (i32, i32) {
    %c0_i32 = arith.constant 0 : i32
    %c0_i32_0 = arith.constant 0 : i32
    return %c0_i32, %arg1 : i32, i32
  }
  func.func @transform_3(%arg0: i32, %arg1: i32) -> (i32, i32) {
    %c0_i32 = arith.constant 0 : i32
    %c0_i32_0 = arith.constant 0 : i32
    return %arg0, %c0_i32 : i32, i32
  }
  func.func @transform_4(%arg0: i32, %arg1: i32) -> (i32, i32) {
    %c0_i32 = arith.constant 0 : i32
    return %arg0, %arg1 : i32, i32
  }
}

</mosaic_0001>

<llo_original>
// kernel: tpu_custom_call.1
$region0: #{tpu_custom_call.1}
  #allocation0 [shape = 'u32[]', space=smem, size = 0x4, offset = 0x4, fixed_abs, tag = 'smem constant byte address 0x4 - core index']
  #allocation1 [shape = 'u32[144,128]{1,0:T(1,128)}', space=vmem, size = 0x12000, scoped, tag = 'internal scratch']
  %s0 = inlined_call_operand.vmem [shape: bf16[128,64], index: 0, kind: input, shape index: {}]
  %s1 = inlined_call_operand.hbm [shape: bf16[2,64,512], index: 1, kind: input, shape index: {}]
  %s2 = inlined_call_operand.vmem [shape: f32[1,1024], index: 2, kind: input, shape index: {}]
  %s3 = inlined_call_operand.vmem [shape: f32[128,1], index: 3, kind: input, shape index: {}]
  %s4 = inlined_call_operand.hbm [shape: f32[8,1024], index: 4, kind: output, shape index: {}]
  %s5 = sld [smem:[#allocation0]]
  $region53: #{tpu_custom_call.1} parent=0
    _
  %s7 = ssub.s32 1, %s5
  %s8 = scalar_select 0, %s7, %s5
  $region1: #{tpu_custom_call.1} parent=0
    #allocation2 [shape = 'u8[131072]{0}', space=vmem, size = 0x20000, scoped, tag = 'input window, operand 1']
    #allocation3 [shape = 's32[2]{0}', space=sflag, size = 0x8, scoped, tag = 'scoped memory for tpu_custom_call.1']
    #allocation4 [shape = 's32[2]{0}', space=sflag, size = 0x8, scoped, tag = 'scoped memory for tpu_custom_call.1']
    #allocation5 [shape = 'u8[32768]{0}', space=vmem, size = 0x8000, scoped, tag = 'output window, operand 0']
    %9 = vsyncpa [#allocation3], 0
    %s10 = scalar_lea.sflag [#allocation3], 1
    %11 = vsyncpa %s10, 0
    %12 = vsyncpa [#allocation4], 0
    %s13 = scalar_lea.sflag [#allocation4], 1
    %14 = vsyncpa %s13, 0
    loop: start=0, step=1, limit=4
    $region2: #{tpu_custom_call.1} parent=1 // loop_pre_header
      _
    $region3: #{tpu_custom_call.1} parent=1 // loop_header
      %s16 = sphi 0, %s20
      %p17 = scmp.ge.s32.totalorder %s16, 4
      %s23 = sphi 0, %s35
      %s24 = sphi 0, %s31
      %s25 = sphi 0, %s23
      %s26 = sphi 0, %s24
      %s27 = sphi 0, %s25
      %s28 = sphi 0, %s26
      %s38 = sphi 0, %s40
      %s41 = sphi 0, %s38
      %s42 = sphi 0, %s41
      %s58 = sphi 0, %s42
      %s64 = sphi 0, %s66
      %s67 = sphi 0, %s64
      %s68 = sphi 0, %s67
      %s84 = sphi 0, %s68
      %s90 = sphi 0, %s92
      %s93 = sphi 0, %s90
      %s94 = sphi 0, %s93
      %s110 = sphi 0, %s94
      %s116 = sphi 0, %s118
      %s119 = sphi 0, %s116
      %s120 = sphi 0, %s119
      %s136 = sphi 0, %s120
      %s144 = sphi 0, %s146
      %s147 = sphi 0, %s144
      %s148 = sphi 0, %s147
      %s164 = sphi 0, %s148
    $region4: #{tpu_custom_call.1} parent=1 // loop_header_branch
      %19 = sbr.rel (%p17) target = $region8
    $region5: #{tpu_custom_call.1} parent=1 // loop_body
      %s21 = ssub.s32 %s16, 1
      %s22 = ssub.s32 %s16, 2
      %s29 = sadd.s32 1, %s24
      %p30 = scmp.ge.s32.totalorder %s29, 2
      %s31 = scalar_select %p30, 0, %s29
      %s32 = sadd.s32 1, %s23
      %s33 = scalar_select %p30, %s32, %s23
      %p34 = scmp.ge.s32.totalorder %s33, 1
      %s35 = scalar_select %p34, 0, %s33
      %s36 = ssub.s32 %s23, %s35
      %p37 = scmp.eq.s32.totalorder %s36, 0
      %s39 = sadd.s32 %s38, 1
      %s40 = scalar_select %p37, %s38, %s39
      %p43 = pneg %p37
      %p44 = scmp.eq.s32.totalorder %s16, 1
      %p45 = por %p43, %p44
      %p46 = scmp.ne.s32.totalorder %s38, %s41
      %p47 = scmp.eq.s32.totalorder %s16, 0
      %p48 = por %p46, %p47
      %p49 = scmp.ne.s32.totalorder %s38, %s41
      %p50 = scmp.eq.s32.totalorder %s21, 1
      %p51 = por %p49, %p50
      %p52 = scmp.ne.s32.totalorder %s41, %s42
      %p53 = scmp.eq.s32.totalorder %s21, 0
      %p54 = por %p52, %p53
      %p55 = scmp.ne.s32.totalorder %s41, %s42
      %p56 = scmp.eq.s32.totalorder %s22, 1
      %p57 = por %p55, %p56
      %p59 = scmp.ne.s32.totalorder %s42, %s58
      %p60 = scmp.eq.s32.totalorder %s22, 0
      %p61 = por %p59, %p60
      %s62 = ssub.s32 %s24, %s31
      %p63 = scmp.eq.s32.totalorder %s62, 0
      %s65 = sadd.s32 %s64, 1
      %s66 = scalar_select %p63, %s64, %s65
      %p69 = pneg %p63
      %p70 = scmp.eq.s32.totalorder %s16, 1
      %p71 = por %p69, %p70
      %p72 = scmp.ne.s32.totalorder %s64, %s67
      %p73 = scmp.eq.s32.totalorder %s16, 0
      %p74 = por %p72, %p73
      %p75 = scmp.ne.s32.totalorder %s64, %s67
      %p76 = scmp.eq.s32.totalorder %s21, 1
      %p77 = por %p75, %p76
      %p78 = scmp.ne.s32.totalorder %s67, %s68
      %p79 = scmp.eq.s32.totalorder %s21, 0
      %p80 = por %p78, %p79
      %p81 = scmp.ne.s32.totalorder %s67, %s68
      %p82 = scmp.eq.s32.totalorder %s22, 1
      %p83 = por %p81, %p82
      %p85 = scmp.ne.s32.totalorder %s68, %s84
      %p86 = scmp.eq.s32.totalorder %s22, 0
      %p87 = por %p85, %p86
      %s88 = ssub.s32 %s24, %s31
      %p89 = scmp.eq.s32.totalorder %s88, 0
      %s91 = sadd.s32 %s90, 1
      %s92 = scalar_select %p89, %s90, %s91
      %p95 = pneg %p89
      %p96 = scmp.eq.s32.totalorder %s16, 1
      %p97 = por %p95, %p96
      %p98 = scmp.ne.s32.totalorder %s90, %s93
      %p99 = scmp.eq.s32.totalorder %s16, 0
      %p100 = por %p98, %p99
      %p101 = scmp.ne.s32.totalorder %s90, %s93
      %p102 = scmp.eq.s32.totalorder %s21, 1
      %p103 = por %p101, %p102
      %p104 = scmp.ne.s32.totalorder %s93, %s94
      %p105 = scmp.eq.s32.totalorder %s21, 0
      %p106 = por %p104, %p105
      %p107 = scmp.ne.s32.totalorder %s93, %s94
      %p108 = scmp.eq.s32.totalorder %s22, 1
      %p109 = por %p107, %p108
      %p111 = scmp.ne.s32.totalorder %s94, %s110
      %p112 = scmp.eq.s32.totalorder %s22, 0
      %p113 = por %p111, %p112
      %s114 = ssub.s32 %s23, %s35
      %p115 = scmp.eq.s32.totalorder %s114, 0
      %s117 = sadd.s32 %s116, 1
      %s118 = scalar_select %p115, %s116, %s117
      %p121 = pneg %p115
      %p122 = scmp.eq.s32.totalorder %s16, 1
      %p123 = por %p121, %p122
      %p124 = scmp.ne.s32.totalorder %s116, %s119
      %p125 = scmp.eq.s32.totalorder %s16, 0
      %p126 = por %p124, %p125
      %p127 = scmp.ne.s32.totalorder %s116, %s119
      %p128 = scmp.eq.s32.totalorder %s21, 1
      %p129 = por %p127, %p128
      %p130 = scmp.ne.s32.totalorder %s119, %s120
      %p131 = scmp.eq.s32.totalorder %s21, 0
      %p132 = por %p130, %p131
      %p133 = scmp.ne.s32.totalorder %s119, %s120
      %p134 = scmp.eq.s32.totalorder %s22, 1
      %p135 = por %p133, %p134
      %p137 = scmp.ne.s32.totalorder %s120, %s136
      %p138 = scmp.eq.s32.totalorder %s22, 0
      %p139 = por %p137, %p138
      %s140 = ssub.s32 %s23, %s35
      %s141 = ssub.s32 %s24, %s31
      %s142 = sor.u32 %s140, %s141
      %p143 = scmp.eq.s32.totalorder %s142, 0
      %s145 = sadd.s32 %s144, 1
      %s146 = scalar_select %p143, %s144, %s145
      %p149 = pneg %p143
      %p150 = scmp.eq.s32.totalorder %s16, 1
      %p151 = por %p149, %p150
      %p152 = scmp.ne.s32.totalorder %s144, %s147
      %p153 = scmp.eq.s32.totalorder %s16, 0
      %p154 = por %p152, %p153
      %p155 = scmp.ne.s32.totalorder %s144, %s147
      %p156 = scmp.eq.s32.totalorder %s21, 1
      %p157 = por %p155, %p156
      %p158 = scmp.ne.s32.totalorder %s147, %s148
      %p159 = scmp.eq.s32.totalorder %s21, 0
      %p160 = por %p158, %p159
      %p161 = scmp.ne.s32.totalorder %s147, %s148
      %p162 = scmp.eq.s32.totalorder %s22, 1
      %p163 = por %p161, %p162
      %p165 = scmp.ne.s32.totalorder %s148, %s164
      %p166 = scmp.eq.s32.totalorder %s22, 0
      %p167 = por %p165, %p166
      %p168 = scmp.le.s32.totalorder 1, %s16
      %p169 = scmp.lt.s32.totalorder %s16, 3
      %p170 = pnand %p168, %p169
      %p171 = pneg %p170
      // Predicated region
      $region9: #{tpu_custom_call.1} parent=5 // pred_check
        _
      $region10: #{tpu_custom_call.1} parent=5 // pred_check_branch
        %173 = sbr.rel (%p170) target = $region12
      $region11: #{tpu_custom_call.1} parent=5 // pred_region
        %s174 = ssub.s32 %s16, 1
        // Predicated region
        $region13: #{tpu_custom_call.1} parent=11 // pred_check
          %p175 = pneg %p54
        $region14: #{tpu_custom_call.1} parent=11 // pred_check_branch
          %177 = sbr.rel (%p175) target = $region16
        $region15: #{tpu_custom_call.1} parent=11 // pred_region
          %s178 = smul.u32 16, %s25
          %p179 = scmp.lt.s32.totalorder %s178, 15
          %s180 = scalar_select %p179, %s178, 15
          %s181 = smul.addr %s180, 4
          %s182 = scalar_lea.vmem %s0, %s181
          %s183 = smul.u32 16, %s25
        $region16: #{tpu_custom_call.1} parent=11 // pred_fallthru
          _
        // Predicated region
        $region17: #{tpu_custom_call.1} parent=11 // pred_check
          %p184 = pneg %p132
        $region18: #{tpu_custom_call.1} parent=11 // pred_check_branch
          %186 = sbr.rel (%p184) target = $region20
        $region19: #{tpu_custom_call.1} parent=11 // pred_region
          %s187 = smul.u32 16, %s25
          %p188 = scmp.lt.s32.totalorder %s187, 15
          %s189 = scalar_select %p188, %s187, 15
          %s190 = smul.addr %s189, 8
          %s191 = scalar_lea.vmem %s3, %s190
          %s192 = smul.u32 16, %s25
        $region20: #{tpu_custom_call.1} parent=11 // pred_fallthru
          _
      $region12: #{tpu_custom_call.1} parent=5 // pred_fallthru
        _
      %p193 = scmp.lt.s32.totalorder %s16, 2
      // Predicated region
      $region21: #{tpu_custom_call.1} parent=5 // pred_check
        %p194 = pneg %p193
      $region22: #{tpu_custom_call.1} parent=5 // pred_check_branch
        %196 = sbr.rel (%p194) target = $region24
      $region23: #{tpu_custom_call.1} parent=5 // pred_region
        // Predicated region
        $region25: #{tpu_custom_call.1} parent=23 // pred_check
          %p197 = pneg %p74
        $region26: #{tpu_custom_call.1} parent=23 // pred_check_branch
          %199 = sbr.rel (%p197) target = $region28
        $region27: #{tpu_custom_call.1} parent=23 // pred_region
          %s200 = sand.u32 %s64, 1
          %s201 = scalar_lea.sflag [#allocation3], %s200
          %s202 = sand.u32 %s64, 1
          %s203 = smul.addr %s202, 128
          %s204 = scalar_lea.vmem [#allocation2], %s203
          %s206 = ssub.s32 2048, 2048
          %207 = vsyncadd %s201, %s206
          %s208 = smul.addr %s24, 32
          %s209 = smul.addr %s208, 64
          %s210 = scalar_lea.hbm %s1, %s209
          %s211 = sshll.u32 %s204, 4
          %s212 = int_to_ptr.vmem [resolvable:$true] %s211
          %217 = dma.hbm_to_vmem [thread:$0]  %s210, 2048, %s212, %s201, 256, 256, 16
        $region28: #{tpu_custom_call.1} parent=23 // pred_fallthru
          _
        // Predicated region
        $region29: #{tpu_custom_call.1} parent=23 // pred_check
          %p218 = pneg %p100
        $region30: #{tpu_custom_call.1} parent=23 // pred_check_branch
          %220 = sbr.rel (%p218) target = $region32
        $region31: #{tpu_custom_call.1} parent=23 // pred_region
          %s221 = smul.u32 4, %s24
          %p222 = scmp.lt.s32.totalorder %s221, 7
          %s223 = scalar_select %p222, %s221, 7
          %s224 = scalar_lea.vmem %s2, %s223
          %s225 = smul.u32 4, %s24
        $region32: #{tpu_custom_call.1} parent=23 // pred_fallthru
          _
      $region24: #{tpu_custom_call.1} parent=5 // pred_fallthru
        _
      %p226 = scmp.le.s32.totalorder 1, %s16
      %p227 = scmp.lt.s32.totalorder %s16, 3
      %p228 = pnand %p226, %p227
      %p229 = pneg %p228
      // Predicated region
      $region33: #{tpu_custom_call.1} parent=5 // pred_check
        _
      $region34: #{tpu_custom_call.1} parent=5 // pred_check_branch
        %231 = sbr.rel (%p228) target = $region36
      $region35: #{tpu_custom_call.1} parent=5 // pred_region
        %s232 = ssub.s32 %s16, 1
        %s233 = sand.u32 %s67, 1
        %s234 = scalar_lea.sflag [#allocation3], %s233
        %s235 = sand.u32 %s67, 1
        %s236 = smul.addr %s235, 128
        %s237 = scalar_lea.vmem [#allocation2], %s236
        // Predicated region
        $region37: #{tpu_custom_call.1} parent=35 // pred_check
          %p238 = pneg %p80
        $region38: #{tpu_custom_call.1} parent=35 // pred_check_branch
          %240 = sbr.rel (%p238) target = $region40
        $region39: #{tpu_custom_call.1} parent=35 // pred_region
          %241 = dma.done %s234, 2048
        $region40: #{tpu_custom_call.1} parent=35 // pred_fallthru
          _
        %s242 = smul.u32 16, %s25
        %p243 = scmp.lt.s32.totalorder %s242, 15
        %s244 = scalar_select %p243, %s242, 15
        %s245 = smul.addr %s244, 4
        %s246 = scalar_lea.vmem %s0, %s245
        %p247 = pneg %p54
        %p248 = pneg %p51
        %s249 = sand.u32 %s67, 1
        %s250 = scalar_lea.sflag [#allocation3], %s249
        %s251 = sand.u32 %s67, 1
        %s252 = smul.addr %s251, 128
        %s253 = scalar_lea.vmem [#allocation2], %s252
        %p254 = pneg %p80
        %p255 = pneg %p77
        %s256 = smul.u32 4, %s26
        %p257 = scmp.lt.s32.totalorder %s256, 7
        %s258 = scalar_select %p257, %s256, 7
        %s259 = scalar_lea.vmem %s2, %s258
        %p260 = pneg %p106
        %p261 = pneg %p103
        %s262 = smul.u32 16, %s25
        %p263 = scmp.lt.s32.totalorder %s262, 15
        %s264 = scalar_select %p263, %s262, 15
        %s265 = smul.addr %s264, 8
        %s266 = scalar_lea.vmem %s3, %s265
        %p267 = pneg %p132
        %p268 = pneg %p129
        %p269 = pneg %p160
        %p270 = pneg %p157
        %s271 = sand.u32 %s147, 1
        %s272 = scalar_lea.sflag [#allocation4], %s271
        %s273 = sand.u32 %s147, 1
        %s274 = smul.addr %s273, 32
        %s275 = scalar_lea.vmem [#allocation5], %s274
        %s276 = smul.u32 16, %s25
        %p277 = scmp.lt.s32.totalorder %s276, 15
        %s278 = scalar_select %p277, %s276, 15
        %s279 = smul.addr %s278, 4
        %s280 = scalar_lea.vmem %s0, %s279
        %s281 = smul.u32 16, %s25
        %s282 = smul.u32 4, %s26
        %p283 = scmp.lt.s32.totalorder %s282, 7
        %s284 = scalar_select %p283, %s282, 7
        %s285 = scalar_lea.vmem %s2, %s284
        %s286 = smul.u32 4, %s26
        %s287 = smul.u32 16, %s25
        %p288 = scmp.lt.s32.totalorder %s287, 15
        %s289 = scalar_select %p288, %s287, 15
        %s290 = smul.addr %s289, 8
        %s291 = scalar_lea.vmem %s3, %s290
        %s292 = smul.u32 16, %s25
        %s293 = smul.u32 4, %s26
        %v295 = vld [vmem:[%s280] sm:$0xf]
        %v296 = vld [vmem:[%s280 + $0x4] sm:$0xf]
        %v297 = vld [vmem:[%s280 + $0x8] sm:$0xf]
        %v298 = vld [vmem:[%s280 + $0xc] sm:$0xf]
        %v299 = vld [vmem:[%s280 + $0x10] sm:$0xf]
        %v300 = vld [vmem:[%s280 + $0x14] sm:$0xf]
        %v301 = vld [vmem:[%s280 + $0x18] sm:$0xf]
        %v302 = vld [vmem:[%s280 + $0x1c] sm:$0xf]
        %v303 = vld [vmem:[%s280 + $0x20] sm:$0xf]
        %v304 = vld [vmem:[%s280 + $0x24] sm:$0xf]
        %v305 = vld [vmem:[%s280 + $0x28] sm:$0xf]
        %v306 = vld [vmem:[%s280 + $0x2c] sm:$0xf]
        %v307 = vld [vmem:[%s280 + $0x30] sm:$0xf]
        %v308 = vld [vmem:[%s280 + $0x34] sm:$0xf]
        %v309 = vld [vmem:[%s280 + $0x38] sm:$0xf]
        %v310 = vld [vmem:[%s280 + $0x3c] sm:$0xf]
        %v311 = vld [vmem:[%s291] sm:$0xff]
        %v312 = vld [vmem:[%s291 + $0x8] sm:$0xff]
        %v313 = vld [vmem:[%s291 + $0x10] sm:$0xff]
        %v314 = vld [vmem:[%s291 + $0x18] sm:$0xff]
        %v315 = vld [vmem:[%s291 + $0x20] sm:$0xff]
        %v316 = vld [vmem:[%s291 + $0x28] sm:$0xff]
        %v317 = vld [vmem:[%s291 + $0x30] sm:$0xff]
        %v318 = vld [vmem:[%s291 + $0x38] sm:$0xff]
        %v319 = vld [vmem:[%s291 + $0x40] sm:$0xff]
        %v320 = vld [vmem:[%s291 + $0x48] sm:$0xff]
        %v321 = vld [vmem:[%s291 + $0x50] sm:$0xff]
        %v322 = vld [vmem:[%s291 + $0x58] sm:$0xff]
        %v323 = vld [vmem:[%s291 + $0x60] sm:$0xff]
        %v324 = vld [vmem:[%s291 + $0x68] sm:$0xff]
        %v325 = vld [vmem:[%s291 + $0x70] sm:$0xff]
        %v326 = vld [vmem:[%s291 + $0x78] sm:$0xff]
        %v327 = vld [vmem:[%s237] sm:$0xff]
        %v328 = vld [vmem:[%s237 + $0x8] sm:$0xff]
        %v329 = vld [vmem:[%s237 + $0x10] sm:$0xff]
        %v330 = vld [vmem:[%s237 + $0x18] sm:$0xff]
        %v331 = vld [vmem:[%s237 + $0x20] sm:$0xff]
        %v332 = vld [vmem:[%s237 + $0x28] sm:$0xff]
        %v333 = vld [vmem:[%s237 + $0x30] sm:$0xff]
        %v334 = vld [vmem:[%s237 + $0x38] sm:$0xff]
        %v335 = vld [vmem:[%s237 + $0x40] sm:$0xff]
        %v336 = vld [vmem:[%s237 + $0x48] sm:$0xff]
        %v337 = vld [vmem:[%s237 + $0x50] sm:$0xff]
        %v338 = vld [vmem:[%s237 + $0x58] sm:$0xff]
        %v339 = vld [vmem:[%s237 + $0x60] sm:$0xff]
        %v340 = vld [vmem:[%s237 + $0x68] sm:$0xff]
        %v341 = vld [vmem:[%s237 + $0x70] sm:$0xff]
        %v342 = vld [vmem:[%s237 + $0x78] sm:$0xff]
        %344 = vset.pattern.permute.xlu0 0
        %345 = vperm.xlu0 %344, %v311
        %v346 = vpop.permute.xlu0 %345
        %349 = vset.pattern.permute.xlu0 0
        %350 = vperm.xlu0 %349, %v312
        %v351 = vpop.permute.xlu0 %350
        %354 = vset.pattern.permute.xlu0 0
        %355 = vperm.xlu0 %354, %v313
        %v356 = vpop.permute.xlu0 %355
        %359 = vset.pattern.permute.xlu0 0
        %360 = vperm.xlu0 %359, %v314
        %v361 = vpop.permute.xlu0 %360
        %364 = vset.pattern.permute.xlu0 0
        %365 = vperm.xlu0 %364, %v315
        %v366 = vpop.permute.xlu0 %365
        %369 = vset.pattern.permute.xlu0 0
        %370 = vperm.xlu0 %369, %v316
        %v371 = vpop.permute.xlu0 %370
        %374 = vset.pattern.permute.xlu0 0
        %375 = vperm.xlu0 %374, %v317
        %v376 = vpop.permute.xlu0 %375
        %379 = vset.pattern.permute.xlu0 0
        %380 = vperm.xlu0 %379, %v318
        %v381 = vpop.permute.xlu0 %380
        %384 = vset.pattern.permute.xlu0 0
        %385 = vperm.xlu0 %384, %v319
        %v386 = vpop.permute.xlu0 %385
        %389 = vset.pattern.permute.xlu0 0
        %390 = vperm.xlu0 %389, %v320
        %v391 = vpop.permute.xlu0 %390
        %394 = vset.pattern.permute.xlu0 0
        %395 = vperm.xlu0 %394, %v321
        %v396 = vpop.permute.xlu0 %395
        %399 = vset.pattern.permute.xlu0 0
        %400 = vperm.xlu0 %399, %v322
        %v401 = vpop.permute.xlu0 %400
        %404 = vset.pattern.permute.xlu0 0
        %405 = vperm.xlu0 %404, %v323
        %v406 = vpop.permute.xlu0 %405
        %409 = vset.pattern.permute.xlu0 0
        %410 = vperm.xlu0 %409, %v324
        %v411 = vpop.permute.xlu0 %410
        %414 = vset.pattern.permute.xlu0 0
        %415 = vperm.xlu0 %414, %v325
        %v416 = vpop.permute.xlu0 %415
        %419 = vset.pattern.permute.xlu0 0
        %420 = vperm.xlu0 %419, %v326
        %v421 = vpop.permute.xlu0 %420
        %v439 = vunpack.c.l.b16 %v295
        %v440 = vunpack.c.l.b16 %v296
        %v441 = vunpack.c.l.b16 %v297
        %v442 = vunpack.c.l.b16 %v298
        %v443 = vunpack.c.l.b16 %v299
        %v444 = vunpack.c.l.b16 %v300
        %v445 = vunpack.c.l.b16 %v301
        %v446 = vunpack.c.l.b16 %v302
        %v447 = vunpack.c.l.b16 %v303
        %v448 = vunpack.c.l.b16 %v304
        %v449 = vunpack.c.l.b16 %v305
        %v450 = vunpack.c.l.b16 %v306
        %v451 = vunpack.c.l.b16 %v307
        %v452 = vunpack.c.l.b16 %v308
        %v453 = vunpack.c.l.b16 %v309
        %v454 = vunpack.c.l.b16 %v310
        %v455 = vpack.c.b16 %v440, %v439
        %v456 = vpack.c.b16 %v442, %v441
        %v457 = vpack.c.b16 %v444, %v443
        %v458 = vpack.c.b16 %v446, %v445
        %v459 = vpack.c.b16 %v448, %v447
        %v460 = vpack.c.b16 %v450, %v449
        %v461 = vpack.c.b16 %v452, %v451
        %v462 = vpack.c.b16 %v454, %v453
        %v479 = vunpack.c.l.b16 %v327
        %v480 = vunpack.c.h.b16 %v327
        %v481 = vunpack.c.l.b16 %v328
        %v482 = vunpack.c.h.b16 %v328
        %v483 = vunpack.c.l.b16 %v329
        %v484 = vunpack.c.h.b16 %v329
        %v485 = vunpack.c.l.b16 %v330
        %v486 = vunpack.c.h.b16 %v330
        %v487 = vunpack.c.l.b16 %v331
        %v488 = vunpack.c.h.b16 %v331
        %v489 = vunpack.c.l.b16 %v332
        %v490 = vunpack.c.h.b16 %v332
        %v491 = vunpack.c.l.b16 %v333
        %v492 = vunpack.c.h.b16 %v333
        %v493 = vunpack.c.l.b16 %v334
        %v494 = vunpack.c.h.b16 %v334
        %v495 = vunpack.c.l.b16 %v335
        %v496 = vunpack.c.h.b16 %v335
        %v497 = vunpack.c.l.b16 %v336
        %v498 = vunpack.c.h.b16 %v336
        %v499 = vunpack.c.l.b16 %v337
        %v500 = vunpack.c.h.b16 %v337
        %v501 = vunpack.c.l.b16 %v338
        %v502 = vunpack.c.h.b16 %v338
        %v503 = vunpack.c.l.b16 %v339
        %v504 = vunpack.c.h.b16 %v339
        %v505 = vunpack.c.l.b16 %v340
        %v506 = vunpack.c.h.b16 %v340
        %v507 = vunpack.c.l.b16 %v341
        %v508 = vunpack.c.h.b16 %v341
        %v509 = vunpack.c.l.b16 %v342
        %v510 = vunpack.c.h.b16 %v342
        %v511 = vpack.c.b16 %v483, %v479
        %v512 = vpack.c.b16 %v484, %v480
        %v513 = vpack.c.b16 %v485, %v481
        %v514 = vpack.c.b16 %v486, %v482
        %v515 = vpack.c.b16 %v491, %v487
        %v516 = vpack.c.b16 %v492, %v488
        %v517 = vpack.c.b16 %v493, %v489
        %v518 = vpack.c.b16 %v494, %v490
        %v519 = vpack.c.b16 %v499, %v495
        %v520 = vpack.c.b16 %v500, %v496
        %v521 = vpack.c.b16 %v501, %v497
        %v522 = vpack.c.b16 %v502, %v498
        %v523 = vpack.c.b16 %v507, %v503
        %v524 = vpack.c.b16 %v508, %v504
        %v525 = vpack.c.b16 %v509, %v505
        %v526 = vpack.c.b16 %v510, %v506
        %vm543 = vcmask 523264
        %v545 = vsel %vm543, %v455, 0
        %v548 = vsel %vm543, %v456, 0
        %v551 = vsel %vm543, %v457, 0
        %v554 = vsel %vm543, %v458, 0
        %v557 = vsel %vm543, %v459, 0
        %v560 = vsel %vm543, %v460, 0
        %v563 = vsel %vm543, %v461, 0
        %v566 = vsel %vm543, %v462, 0
        %568 = vmatprep.subr.bf16.mxu0 %v512
        %569 = vmatpush1.bf16.msra.mxu0 %v511
        %570 = vmatprep.subr.bf16.mxu0 %v516
        %571 = vmatpush1.bf16.msra.mxu0 %v515
        %572 = vmatprep.subr.bf16.mxu0 %v520
        %573 = vmatpush1.bf16.msra.mxu0 %v519
        %574 = vmatprep.subr.bf16.mxu0 %v524
        %575 = vmatpush1.bf16.msra.mxu0 %v523
        %576 = vmatprep.subr.bf16.mxu0 0
        %577 = vmatpush1.bf16.msra.mxu0 0
        %578 = vmatprep.subr.bf16.mxu0 0
        %579 = vmatpush1.bf16.msra.mxu0 0
        %580 = vmatprep.subr.bf16.mxu0 0
        %581 = vmatpush1.bf16.msra.mxu0 0
        %582 = vmatprep.subr.bf16.mxu0 0
        %583 = vmatpush1.bf16.msra.mxu0 0
        %584 = vmatprep.subr.bf16.mxu0 0
        %585 = vmatpush1.bf16.msra.mxu0 0
        %586 = vmatprep.subr.bf16.mxu0 0
        %587 = vmatpush1.bf16.msra.mxu0 0
        %588 = vmatprep.subr.bf16.mxu0 0
        %589 = vmatpush1.bf16.msra.mxu0 0
        %590 = vmatprep.subr.bf16.mxu0 0
        %591 = vmatpush1.bf16.msra.mxu0 0
        %592 = vmatprep.subr.bf16.mxu0 0
        %593 = vmatpush1.bf16.msra.mxu0 0
        %594 = vmatprep.subr.bf16.mxu0 0
        %595 = vmatpush1.bf16.msra.mxu0 0
        %596 = vmatprep.subr.bf16.mxu0 0
        %597 = vmatpush1.bf16.msra.mxu0 0
        %598 = vmatprep.subr.bf16.mxu0 0
        %599 = vmatpush1.bf16.msra.mxu0 0
        %600 = vmatprep.mubr.bf16.mxu0 0
        %601 = vmatmul.mubr.bf16.gmra.mrb[0].mxu0 %v545
        %v602 = vpop.f32.mrb[0].mxu0
        %v603 = vadd.f32 %v346, %v602
        %v604 = vpop.f32.mrb[0].mxu0
        %v605 = vadd.f32 %v346, %v604
        %v606 = vpop.f32.mrb[0].mxu0
        %v607 = vadd.f32 %v351, %v606
        %v608 = vpop.f32.mrb[0].mxu0
        %v609 = vadd.f32 %v351, %v608
        %610 = vmatprep.mubr.bf16.mxu0 0
        %611 = vmatmul.mubr.bf16.gmra.mrb[0].mxu0 %v548
        %v612 = vpop.f32.mrb[0].mxu0
        %v613 = vadd.f32 %v356, %v612
        %v614 = vpop.f32.mrb[0].mxu0
        %v615 = vadd.f32 %v356, %v614
        %v616 = vpop.f32.mrb[0].mxu0
        %v617 = vadd.f32 %v361, %v616
        %v618 = vpop.f32.mrb[0].mxu0
        %v619 = vadd.f32 %v361, %v618
        %620 = vmatprep.mubr.bf16.mxu0 0
        %621 = vmatmul.mubr.bf16.gmra.mrb[0].mxu0 %v551
        %v622 = vpop.f32.mrb[0].mxu0
        %v623 = vadd.f32 %v366, %v622
        %v624 = vpop.f32.mrb[0].mxu0
        %v625 = vadd.f32 %v366, %v624
        %v626 = vpop.f32.mrb[0].mxu0
        %v627 = vadd.f32 %v371, %v626
        %v628 = vpop.f32.mrb[0].mxu0
        %v629 = vadd.f32 %v371, %v628
        %630 = vmatprep.mubr.bf16.mxu0 0
        %631 = vmatmul.mubr.bf16.gmra.mrb[0].mxu0 %v554
        %v632 = vpop.f32.mrb[0].mxu0
        %v633 = vadd.f32 %v376, %v632
        %v634 = vpop.f32.mrb[0].mxu0
        %v635 = vadd.f32 %v376, %v634
        %v636 = vpop.f32.mrb[0].mxu0
        %v637 = vadd.f32 %v381, %v636
        %v638 = vpop.f32.mrb[0].mxu0
        %v639 = vadd.f32 %v381, %v638
        %640 = vmatprep.mubr.bf16.mxu0 0
        %641 = vmatmul.mubr.bf16.gmra.mrb[0].mxu0 %v557
        %v642 = vpop.f32.mrb[0].mxu0
        %v643 = vadd.f32 %v386, %v642
        %v644 = vpop.f32.mrb[0].mxu0
        %v645 = vadd.f32 %v386, %v644
        %v646 = vpop.f32.mrb[0].mxu0
        %v647 = vadd.f32 %v391, %v646
        %v648 = vpop.f32.mrb[0].mxu0
        %v649 = vadd.f32 %v391, %v648
        %650 = vmatprep.mubr.bf16.mxu0 0
        %651 = vmatmul.mubr.bf16.gmra.mrb[0].mxu0 %v560
        %v652 = vpop.f32.mrb[0].mxu0
        %v653 = vadd.f32 %v396, %v652
        %v654 = vpop.f32.mrb[0].mxu0
        %v655 = vadd.f32 %v396, %v654
        %v656 = vpop.f32.mrb[0].mxu0
        %v657 = vadd.f32 %v401, %v656
        %v658 = vpop.f32.mrb[0].mxu0
        %v659 = vadd.f32 %v401, %v658
        %660 = vmatprep.mubr.bf16.mxu0 0
        %661 = vmatmul.mubr.bf16.gmra.mrb[0].mxu0 %v563
        %v662 = vpop.f32.mrb[0].mxu0
        %v663 = vadd.f32 %v406, %v662
        %v664 = vpop.f32.mrb[0].mxu0
        %v665 = vadd.f32 %v406, %v664
        %v666 = vpop.f32.mrb[0].mxu0
        %v667 = vadd.f32 %v411, %v666
        %v668 = vpop.f32.mrb[0].mxu0
        %v669 = vadd.f32 %v411, %v668
        %670 = vmatprep.mubr.bf16.mxu0 0
        %671 = vmatmul.mubr.bf16.gmra.mrb[0].mxu0 %v566
        %v672 = vpop.f32.mrb[0].mxu0
        %v673 = vadd.f32 %v416, %v672
        %v674 = vpop.f32.mrb[0].mxu0
        %v675 = vadd.f32 %v416, %v674
        %v676 = vpop.f32.mrb[0].mxu0
        %v677 = vadd.f32 %v421, %v676
        %v678 = vpop.f32.mrb[0].mxu0
        %v679 = vadd.f32 %v421, %v678
        %680 = vdwg.mxu0
        %681 = vmatprep.subr.bf16.mxu0 %v514
        %682 = vmatpush1.bf16.msra.mxu0 %v513
        %683 = vmatprep.subr.bf16.mxu0 %v518
        %684 = vmatpush1.bf16.msra.mxu0 %v517
        %685 = vmatprep.subr.bf16.mxu0 %v522
        %686 = vmatpush1.bf16.msra.mxu0 %v521
        %687 = vmatprep.subr.bf16.mxu0 %v526
        %688 = vmatpush1.bf16.msra.mxu0 %v525
        %689 = vmatprep.subr.bf16.mxu0 0
        %690 = vmatpush1.bf16.msra.mxu0 0
        %691 = vmatprep.subr.bf16.mxu0 0
        %692 = vmatpush1.bf16.msra.mxu0 0
        %693 = vmatprep.subr.bf16.mxu0 0
        %694 = vmatpush1.bf16.msra.mxu0 0
        %695 = vmatprep.subr.bf16.mxu0 0
        %696 = vmatpush1.bf16.msra.mxu0 0
        %697 = vmatprep.subr.bf16.mxu0 0
        %698 = vmatpush1.bf16.msra.mxu0 0
        %699 = vmatprep.subr.bf16.mxu0 0
        %700 = vmatpush1.bf16.msra.mxu0 0
        %701 = vmatprep.subr.bf16.mxu0 0
        %702 = vmatpush1.bf16.msra.mxu0 0
        %703 = vmatprep.subr.bf16.mxu0 0
        %704 = vmatpush1.bf16.msra.mxu0 0
        %705 = vmatprep.subr.bf16.mxu0 0
        %706 = vmatpush1.bf16.msra.mxu0 0
        %707 = vmatprep.subr.bf16.mxu0 0
        %708 = vmatpush1.bf16.msra.mxu0 0
        %709 = vmatprep.subr.bf16.mxu0 0
        %710 = vmatpush1.bf16.msra.mxu0 0
        %711 = vmatprep.subr.bf16.mxu0 0
        %712 = vmatpush1.bf16.msra.mxu0 0
        %713 = vmatprep.mubr.bf16.mxu0 0
        %714 = vmatmul.mubr.bf16.gmra.mrb[0].mxu0 %v545
        %v715 = vpop.f32.mrb[0].mxu0
        %v716 = vadd.f32 %v346, %v715
        %v717 = vpop.f32.mrb[0].mxu0
        %v718 = vadd.f32 %v346, %v717
        %v719 = vpop.f32.mrb[0].mxu0
        %v720 = vadd.f32 %v351, %v719
        %v721 = vpop.f32.mrb[0].mxu0
        %v722 = vadd.f32 %v351, %v721
        %723 = vmatprep.mubr.bf16.mxu0 0
        %724 = vmatmul.mubr.bf16.gmra.mrb[0].mxu0 %v548
        %v725 = vpop.f32.mrb[0].mxu0
        %v726 = vadd.f32 %v356, %v725
        %v727 = vpop.f32.mrb[0].mxu0
        %v728 = vadd.f32 %v356, %v727
        %v729 = vpop.f32.mrb[0].mxu0
        %v730 = vadd.f32 %v361, %v729
        %v731 = vpop.f32.mrb[0].mxu0
        %v732 = vadd.f32 %v361, %v731
        %733 = vmatprep.mubr.bf16.mxu0 0
        %734 = vmatmul.mubr.bf16.gmra.mrb[0].mxu0 %v551
        %v735 = vpop.f32.mrb[0].mxu0
        %v736 = vadd.f32 %v366, %v735
        %v737 = vpop.f32.mrb[0].mxu0
        %v738 = vadd.f32 %v366, %v737
        %v739 = vpop.f32.mrb[0].mxu0
        %v740 = vadd.f32 %v371, %v739
        %v741 = vpop.f32.mrb[0].mxu0
        %v742 = vadd.f32 %v371, %v741
        %743 = vmatprep.mubr.bf16.mxu0 0
        %744 = vmatmul.mubr.bf16.gmra.mrb[0].mxu0 %v554
        %v745 = vpop.f32.mrb[0].mxu0
        %v746 = vadd.f32 %v376, %v745
        %v747 = vpop.f32.mrb[0].mxu0
        %v748 = vadd.f32 %v376, %v747
        %v749 = vpop.f32.mrb[0].mxu0
        %v750 = vadd.f32 %v381, %v749
        %v751 = vpop.f32.mrb[0].mxu0
        %v752 = vadd.f32 %v381, %v751
        %753 = vmatprep.mubr.bf16.mxu0 0
        %754 = vmatmul.mubr.bf16.gmra.mrb[0].mxu0 %v557
        %v755 = vpop.f32.mrb[0].mxu0
        %v756 = vadd.f32 %v386, %v755
        %v757 = vpop.f32.mrb[0].mxu0
        %v758 = vadd.f32 %v386, %v757
        %v759 = vpop.f32.mrb[0].mxu0
        %v760 = vadd.f32 %v391, %v759
        %v761 = vpop.f32.mrb[0].mxu0
        %v762 = vadd.f32 %v391, %v761
        %763 = vmatprep.mubr.bf16.mxu0 0
        %764 = vmatmul.mubr.bf16.gmra.mrb[0].mxu0 %v560
        %v765 = vpop.f32.mrb[0].mxu0
        %v766 = vadd.f32 %v396, %v765
        %v767 = vpop.f32.mrb[0].mxu0
        %v768 = vadd.f32 %v396, %v767
        %v769 = vpop.f32.mrb[0].mxu0
        %v770 = vadd.f32 %v401, %v769
        %v771 = vpop.f32.mrb[0].mxu0
        %v772 = vadd.f32 %v401, %v771
        %773 = vmatprep.mubr.bf16.mxu0 0
        %774 = vmatmul.mubr.bf16.gmra.mrb[0].mxu0 %v563
        %v775 = vpop.f32.mrb[0].mxu0
        %v776 = vadd.f32 %v406, %v775
        %v777 = vpop.f32.mrb[0].mxu0
        %v778 = vadd.f32 %v406, %v777
        %v779 = vpop.f32.mrb[0].mxu0
        %v780 = vadd.f32 %v411, %v779
        %v781 = vpop.f32.mrb[0].mxu0
        %v782 = vadd.f32 %v411, %v781
        %783 = vmatprep.mubr.bf16.mxu0 0
        %784 = vmatmul.mubr.bf16.gmra.mrb[0].mxu0 %v566
        %v785 = vpop.f32.mrb[0].mxu0
        %v786 = vadd.f32 %v416, %v785
        %v787 = vpop.f32.mrb[0].mxu0
        %v788 = vadd.f32 %v416, %v787
        %v789 = vpop.f32.mrb[0].mxu0
        %v790 = vadd.f32 %v421, %v789
        %v791 = vpop.f32.mrb[0].mxu0
        %v792 = vadd.f32 %v421, %v791
        %793 = vdwg.mxu0
        %v794 = vmax.f32 %v603, %v607
        %v795 = vrot.slane %v794, 4
        %v796 = vmax.f32 %v794, %v795
        %v797 = vrot.slane %v796, 2
        %v798 = vmax.f32 %v796, %v797
        %v799 = vrot.slane %v798, 1
        %v800 = vmax.f32 %v798, %v799
        %v801 = vmax.f32 %v605, %v609
        %v802 = vrot.slane %v801, 4
        %v803 = vmax.f32 %v801, %v802
        %v804 = vrot.slane %v803, 2
        %v805 = vmax.f32 %v803, %v804
        %v806 = vrot.slane %v805, 1
        %v807 = vmax.f32 %v805, %v806
        %v808 = vmax.f32 %v716, %v720
        %v809 = vrot.slane %v808, 4
        %v810 = vmax.f32 %v808, %v809
        %v811 = vrot.slane %v810, 2
        %v812 = vmax.f32 %v810, %v811
        %v813 = vrot.slane %v812, 1
        %v814 = vmax.f32 %v812, %v813
        %v815 = vmax.f32 %v718, %v722
        %v816 = vrot.slane %v815, 4
        %v817 = vmax.f32 %v815, %v816
        %v818 = vrot.slane %v817, 2
        %v819 = vmax.f32 %v817, %v818
        %v820 = vrot.slane %v819, 1
        %v821 = vmax.f32 %v819, %v820
        %v822 = vmax.f32 %v613, %v617
        %v823 = vrot.slane %v822, 4
        %v824 = vmax.f32 %v822, %v823
        %v825 = vrot.slane %v824, 2
        %v826 = vmax.f32 %v824, %v825
        %v827 = vrot.slane %v826, 1
        %v828 = vmax.f32 %v826, %v827
        %v829 = vmax.f32 %v615, %v619
        %v830 = vrot.slane %v829, 4
        %v831 = vmax.f32 %v829, %v830
        %v832 = vrot.slane %v831, 2
        %v833 = vmax.f32 %v831, %v832
        %v834 = vrot.slane %v833, 1
        %v835 = vmax.f32 %v833, %v834
        %v836 = vmax.f32 %v726, %v730
        %v837 = vrot.slane %v836, 4
        %v838 = vmax.f32 %v836, %v837
        %v839 = vrot.slane %v838, 2
        %v840 = vmax.f32 %v838, %v839
        %v841 = vrot.slane %v840, 1
        %v842 = vmax.f32 %v840, %v841
        %v843 = vmax.f32 %v728, %v732
        %v844 = vrot.slane %v843, 4
        %v845 = vmax.f32 %v843, %v844
        %v846 = vrot.slane %v845, 2
        %v847 = vmax.f32 %v845, %v846
        %v848 = vrot.slane %v847, 1
        %v849 = vmax.f32 %v847, %v848
        %v850 = vmax.f32 %v623, %v627
        %v851 = vrot.slane %v850, 4
        %v852 = vmax.f32 %v850, %v851
        %v853 = vrot.slane %v852, 2
        %v854 = vmax.f32 %v852, %v853
        %v855 = vrot.slane %v854, 1
        %v856 = vmax.f32 %v854, %v855
        %v857 = vmax.f32 %v625, %v629
        %v858 = vrot.slane %v857, 4
        %v859 = vmax.f32 %v857, %v858
        %v860 = vrot.slane %v859, 2
        %v861 = vmax.f32 %v859, %v860
        %v862 = vrot.slane %v861, 1
        %v863 = vmax.f32 %v861, %v862
        %v864 = vmax.f32 %v736, %v740
        %v865 = vrot.slane %v864, 4
        %v866 = vmax.f32 %v864, %v865
        %v867 = vrot.slane %v866, 2
        %v868 = vmax.f32 %v866, %v867
        %v869 = vrot.slane %v868, 1
        %v870 = vmax.f32 %v868, %v869
        %v871 = vmax.f32 %v738, %v742
        %v872 = vrot.slane %v871, 4
        %v873 = vmax.f32 %v871, %v872
        %v874 = vrot.slane %v873, 2
        %v875 = vmax.f32 %v873, %v874
        %v876 = vrot.slane %v875, 1
        %v877 = vmax.f32 %v875, %v876
        %v878 = vmax.f32 %v633, %v637
        %v879 = vrot.slane %v878, 4
        %v880 = vmax.f32 %v878, %v879
        %v881 = vrot.slane %v880, 2
        %v882 = vmax.f32 %v880, %v881
        %v883 = vrot.slane %v882, 1
        %v884 = vmax.f32 %v882, %v883
        %v885 = vmax.f32 %v635, %v639
        %v886 = vrot.slane %v885, 4
        %v887 = vmax.f32 %v885, %v886
        %v888 = vrot.slane %v887, 2
        %v889 = vmax.f32 %v887, %v888
        %v890 = vrot.slane %v889, 1
        %v891 = vmax.f32 %v889, %v890
        %v892 = vmax.f32 %v746, %v750
        %v893 = vrot.slane %v892, 4
        %v894 = vmax.f32 %v892, %v893
        %v895 = vrot.slane %v894, 2
        %v896 = vmax.f32 %v894, %v895
        %v897 = vrot.slane %v896, 1
        %v898 = vmax.f32 %v896, %v897
        %v899 = vmax.f32 %v748, %v752
        %v900 = vrot.slane %v899, 4
        %v901 = vmax.f32 %v899, %v900
        %v902 = vrot.slane %v901, 2
        %v903 = vmax.f32 %v901, %v902
        %v904 = vrot.slane %v903, 1
        %v905 = vmax.f32 %v903, %v904
        %v906 = vmax.f32 %v643, %v647
        %v907 = vrot.slane %v906, 4
        %v908 = vmax.f32 %v906, %v907
        %v909 = vrot.slane %v908, 2
        %v910 = vmax.f32 %v908, %v909
        %v911 = vrot.slane %v910, 1
        %v912 = vmax.f32 %v910, %v911
        %v913 = vmax.f32 %v645, %v649
        %v914 = vrot.slane %v913, 4
        %v915 = vmax.f32 %v913, %v914
        %v916 = vrot.slane %v915, 2
        %v917 = vmax.f32 %v915, %v916
        %v918 = vrot.slane %v917, 1
        %v919 = vmax.f32 %v917, %v918
        %v920 = vmax.f32 %v756, %v760
        %v921 = vrot.slane %v920, 4
        %v922 = vmax.f32 %v920, %v921
        %v923 = vrot.slane %v922, 2
        %v924 = vmax.f32 %v922, %v923
        %v925 = vrot.slane %v924, 1
        %v926 = vmax.f32 %v924, %v925
        %v927 = vmax.f32 %v758, %v762
        %v928 = vrot.slane %v927, 4
        %v929 = vmax.f32 %v927, %v928
        %v930 = vrot.slane %v929, 2
        %v931 = vmax.f32 %v929, %v930
        %v932 = vrot.slane %v931, 1
        %v933 = vmax.f32 %v931, %v932
        %v934 = vmax.f32 %v653, %v657
        %v935 = vrot.slane %v934, 4
        %v936 = vmax.f32 %v934, %v935
        %v937 = vrot.slane %v936, 2
        %v938 = vmax.f32 %v936, %v937
        %v939 = vrot.slane %v938, 1
        %v940 = vmax.f32 %v938, %v939
        %v941 = vmax.f32 %v655, %v659
        %v942 = vrot.slane %v941, 4
        %v943 = vmax.f32 %v941, %v942
        %v944 = vrot.slane %v943, 2
        %v945 = vmax.f32 %v943, %v944
        %v946 = vrot.slane %v945, 1
        %v947 = vmax.f32 %v945, %v946
        %v948 = vmax.f32 %v766, %v770
        %v949 = vrot.slane %v948, 4
        %v950 = vmax.f32 %v948, %v949
        %v951 = vrot.slane %v950, 2
        %v952 = vmax.f32 %v950, %v951
        %v953 = vrot.slane %v952, 1
        %v954 = vmax.f32 %v952, %v953
        %v955 = vmax.f32 %v768, %v772
        %v956 = vrot.slane %v955, 4
        %v957 = vmax.f32 %v955, %v956
        %v958 = vrot.slane %v957, 2
        %v959 = vmax.f32 %v957, %v958
        %v960 = vrot.slane %v959, 1
        %v961 = vmax.f32 %v959, %v960
        %v962 = vmax.f32 %v663, %v667
        %v963 = vrot.slane %v962, 4
        %v964 = vmax.f32 %v962, %v963
        %v965 = vrot.slane %v964, 2
        %v966 = vmax.f32 %v964, %v965
        %v967 = vrot.slane %v966, 1
        %v968 = vmax.f32 %v966, %v967
        %v969 = vmax.f32 %v665, %v669
        %v970 = vrot.slane %v969, 4
        %v971 = vmax.f32 %v969, %v970
        %v972 = vrot.slane %v971, 2
        %v973 = vmax.f32 %v971, %v972
        %v974 = vrot.slane %v973, 1
        %v975 = vmax.f32 %v973, %v974
        %v976 = vmax.f32 %v776, %v780
        %v977 = vrot.slane %v976, 4
        %v978 = vmax.f32 %v976, %v977
        %v979 = vrot.slane %v978, 2
        %v980 = vmax.f32 %v978, %v979
        %v981 = vrot.slane %v980, 1
        %v982 = vmax.f32 %v980, %v981
        %v983 = vmax.f32 %v778, %v782
        %v984 = vrot.slane %v983, 4
        %v985 = vmax.f32 %v983, %v984
        %v986 = vrot.slane %v985, 2
        %v987 = vmax.f32 %v985, %v986
        %v988 = vrot.slane %v987, 1
        %v989 = vmax.f32 %v987, %v988
        %v990 = vmax.f32 %v673, %v677
        %v991 = vrot.slane %v990, 4
        %v992 = vmax.f32 %v990, %v991
        %v993 = vrot.slane %v992, 2
        %v994 = vmax.f32 %v992, %v993
        %v995 = vrot.slane %v994, 1
        %v996 = vmax.f32 %v994, %v995
        %v997 = vmax.f32 %v675, %v679
        %v998 = vrot.slane %v997, 4
        %v999 = vmax.f32 %v997, %v998
        %v1000 = vrot.slane %v999, 2
        %v1001 = vmax.f32 %v999, %v1000
        %v1002 = vrot.slane %v1001, 1
        %v1003 = vmax.f32 %v1001, %v1002
        %v1004 = vmax.f32 %v786, %v790
        %v1005 = vrot.slane %v1004, 4
        %v1006 = vmax.f32 %v1004, %v1005
        %v1007 = vrot.slane %v1006, 2
        %v1008 = vmax.f32 %v1006, %v1007
        %v1009 = vrot.slane %v1008, 1
        %v1010 = vmax.f32 %v1008, %v1009
        %v1011 = vmax.f32 %v788, %v792
        %v1012 = vrot.slane %v1011, 4
        %v1013 = vmax.f32 %v1011, %v1012
        %v1014 = vrot.slane %v1013, 2
        %v1015 = vmax.f32 %v1013, %v1014
        %v1016 = vrot.slane %v1015, 1
        %v1017 = vmax.f32 %v1015, %v1016
        %v1018 = vld [vmem:[%s285] sm:$0xf]
        %v1020 = vlaneseq
        %v1021 = vshrl.u32 %v1020, 7
        %v1022 = vsub.s32 0, %v1021
        %v1023 = vrot.slane %v1018, %v1022
        %v1024 = vlaneseq
        %v1025 = vshrl.u32 %v1024, 7
        %v1026 = vsub.s32 1, %v1025
        %v1027 = vrot.slane %v1018, %v1026
        %v1028 = vlaneseq
        %v1029 = vshrl.u32 %v1028, 7
        %v1030 = vsub.s32 2, %v1029
        %v1031 = vrot.slane %v1018, %v1030
        %v1032 = vlaneseq
        %v1033 = vshrl.u32 %v1032, 7
        %v1034 = vsub.s32 3, %v1033
        %v1035 = vrot.slane %v1018, %v1034
        %v1040 = vadd.f32 %v800, %v1023
        %v1041 = vadd.f32 %v807, %v1027
        %v1042 = vadd.f32 %v814, %v1031
        %v1043 = vadd.f32 %v821, %v1035
        %v1044 = vadd.f32 %v828, %v1023
        %v1045 = vadd.f32 %v835, %v1027
        %v1046 = vadd.f32 %v842, %v1031
        %v1047 = vadd.f32 %v849, %v1035
        %v1048 = vadd.f32 %v856, %v1023
        %v1049 = vadd.f32 %v863, %v1027
        %v1050 = vadd.f32 %v870, %v1031
        %v1051 = vadd.f32 %v877, %v1035
        %v1052 = vadd.f32 %v884, %v1023
        %v1053 = vadd.f32 %v891, %v1027
        %v1054 = vadd.f32 %v898, %v1031
        %v1055 = vadd.f32 %v905, %v1035
        %v1056 = vadd.f32 %v912, %v1023
        %v1057 = vadd.f32 %v919, %v1027
        %v1058 = vadd.f32 %v926, %v1031
        %v1059 = vadd.f32 %v933, %v1035
        %v1060 = vadd.f32 %v940, %v1023
        %v1061 = vadd.f32 %v947, %v1027
        %v1062 = vadd.f32 %v954, %v1031
        %v1063 = vadd.f32 %v961, %v1035
        %v1064 = vadd.f32 %v968, %v1023
        %v1065 = vadd.f32 %v975, %v1027
        %v1066 = vadd.f32 %v982, %v1031
        %v1067 = vadd.f32 %v989, %v1035
        %v1068 = vadd.f32 %v996, %v1023
        %v1069 = vadd.f32 %v1003, %v1027
        %v1070 = vadd.f32 %v1010, %v1031
        %v1071 = vadd.f32 %v1017, %v1035
        %v1072 = vmax.f32 %v1040, 0.0
        %v1073 = vmax.f32 %v1041, 0.0
        %v1074 = vmax.f32 %v1042, 0.0
        %v1075 = vmax.f32 %v1043, 0.0
        %v1076 = vmax.f32 %v1044, 0.0
        %v1077 = vmax.f32 %v1045, 0.0
        %v1078 = vmax.f32 %v1046, 0.0
        %v1079 = vmax.f32 %v1047, 0.0
        %v1080 = vmax.f32 %v1048, 0.0
        %v1081 = vmax.f32 %v1049, 0.0
        %v1082 = vmax.f32 %v1050, 0.0
        %v1083 = vmax.f32 %v1051, 0.0
        %v1084 = vmax.f32 %v1052, 0.0
        %v1085 = vmax.f32 %v1053, 0.0
        %v1086 = vmax.f32 %v1054, 0.0
        %v1087 = vmax.f32 %v1055, 0.0
        %v1088 = vmax.f32 %v1056, 0.0
        %v1089 = vmax.f32 %v1057, 0.0
        %v1090 = vmax.f32 %v1058, 0.0
        %v1091 = vmax.f32 %v1059, 0.0
        %v1092 = vmax.f32 %v1060, 0.0
        %v1093 = vmax.f32 %v1061, 0.0
        %v1094 = vmax.f32 %v1062, 0.0
        %v1095 = vmax.f32 %v1063, 0.0
        %v1096 = vmax.f32 %v1064, 0.0
        %v1097 = vmax.f32 %v1065, 0.0
        %v1098 = vmax.f32 %v1066, 0.0
        %v1099 = vmax.f32 %v1067, 0.0
        %v1100 = vmax.f32 %v1068, 0.0
        %v1101 = vmax.f32 %v1069, 0.0
        %v1102 = vmax.f32 %v1070, 0.0
        %v1103 = vmax.f32 %v1071, 0.0
        %v1104 = vadd.f32 %v1072, 1.0
        %v1105 = vlog2.pop %v1104
        %v1106 = vmul.f32 %v1105, 0.6931472
        %v1107 = vmul.f32 -0.5, %v1072
        %v1108 = vadd.f32 %v1107, 1.0
        %v1109 = vmul.f32 %v1108, %v1072
        %v1110 = vand.u32 2147483647, %v1072
        %vm1111 = vcmp.lt.f32.partialorder %v1110, 0.0004427343
        %v1112 = vsel %vm1111, %v1109, %v1106
        %v1113 = vadd.f32 %v1073, 1.0
        %v1114 = vlog2.pop %v1113
        %v1115 = vmul.f32 %v1114, 0.6931472
        %v1116 = vmul.f32 -0.5, %v1073
        %v1117 = vadd.f32 %v1116, 1.0
        %v1118 = vmul.f32 %v1117, %v1073
        %v1119 = vand.u32 2147483647, %v1073
        %vm1120 = vcmp.lt.f32.partialorder %v1119, 0.0004427343
        %v1121 = vsel %vm1120, %v1118, %v1115
        %v1122 = vadd.f32 %v1074, 1.0
        %v1123 = vlog2.pop %v1122
        %v1124 = vmul.f32 %v1123, 0.6931472
        %v1125 = vmul.f32 -0.5, %v1074
        %v1126 = vadd.f32 %v1125, 1.0
        %v1127 = vmul.f32 %v1126, %v1074
        %v1128 = vand.u32 2147483647, %v1074
        %vm1129 = vcmp.lt.f32.partialorder %v1128, 0.0004427343
        %v1130 = vsel %vm1129, %v1127, %v1124
        %v1131 = vadd.f32 %v1075, 1.0
        %v1132 = vlog2.pop %v1131
        %v1133 = vmul.f32 %v1132, 0.6931472
        %v1134 = vmul.f32 -0.5, %v1075
        %v1135 = vadd.f32 %v1134, 1.0
        %v1136 = vmul.f32 %v1135, %v1075
        %v1137 = vand.u32 2147483647, %v1075
        %vm1138 = vcmp.lt.f32.partialorder %v1137, 0.0004427343
        %v1139 = vsel %vm1138, %v1136, %v1133
        %v1140 = vadd.f32 %v1076, 1.0
        %v1141 = vlog2.pop %v1140
        %v1142 = vmul.f32 %v1141, 0.6931472
        %v1143 = vmul.f32 -0.5, %v1076
        %v1144 = vadd.f32 %v1143, 1.0
        %v1145 = vmul.f32 %v1144, %v1076
        %v1146 = vand.u32 2147483647, %v1076
        %vm1147 = vcmp.lt.f32.partialorder %v1146, 0.0004427343
        %v1148 = vsel %vm1147, %v1145, %v1142
        %v1149 = vadd.f32 %v1077, 1.0
        %v1150 = vlog2.pop %v1149
        %v1151 = vmul.f32 %v1150, 0.6931472
        %v1152 = vmul.f32 -0.5, %v1077
        %v1153 = vadd.f32 %v1152, 1.0
        %v1154 = vmul.f32 %v1153, %v1077
        %v1155 = vand.u32 2147483647, %v1077
        %vm1156 = vcmp.lt.f32.partialorder %v1155, 0.0004427343
        %v1157 = vsel %vm1156, %v1154, %v1151
        %v1158 = vadd.f32 %v1078, 1.0
        %v1159 = vlog2.pop %v1158
        %v1160 = vmul.f32 %v1159, 0.6931472
        %v1161 = vmul.f32 -0.5, %v1078
        %v1162 = vadd.f32 %v1161, 1.0
        %v1163 = vmul.f32 %v1162, %v1078
        %v1164 = vand.u32 2147483647, %v1078
        %vm1165 = vcmp.lt.f32.partialorder %v1164, 0.0004427343
        %v1166 = vsel %vm1165, %v1163, %v1160
        %v1167 = vadd.f32 %v1079, 1.0
        %v1168 = vlog2.pop %v1167
        %v1169 = vmul.f32 %v1168, 0.6931472
        %v1170 = vmul.f32 -0.5, %v1079
        %v1171 = vadd.f32 %v1170, 1.0
        %v1172 = vmul.f32 %v1171, %v1079
        %v1173 = vand.u32 2147483647, %v1079
        %vm1174 = vcmp.lt.f32.partialorder %v1173, 0.0004427343
        %v1175 = vsel %vm1174, %v1172, %v1169
        %v1176 = vadd.f32 %v1080, 1.0
        %v1177 = vlog2.pop %v1176
        %v1178 = vmul.f32 %v1177, 0.6931472
        %v1179 = vmul.f32 -0.5, %v1080
        %v1180 = vadd.f32 %v1179, 1.0
        %v1181 = vmul.f32 %v1180, %v1080
        %v1182 = vand.u32 2147483647, %v1080
        %vm1183 = vcmp.lt.f32.partialorder %v1182, 0.0004427343
        %v1184 = vsel %vm1183, %v1181, %v1178
        %v1185 = vadd.f32 %v1081, 1.0
        %v1186 = vlog2.pop %v1185
        %v1187 = vmul.f32 %v1186, 0.6931472
        %v1188 = vmul.f32 -0.5, %v1081
        %v1189 = vadd.f32 %v1188, 1.0
        %v1190 = vmul.f32 %v1189, %v1081
        %v1191 = vand.u32 2147483647, %v1081
        %vm1192 = vcmp.lt.f32.partialorder %v1191, 0.0004427343
        %v1193 = vsel %vm1192, %v1190, %v1187
        %v1194 = vadd.f32 %v1082, 1.0
        %v1195 = vlog2.pop %v1194
        %v1196 = vmul.f32 %v1195, 0.6931472
        %v1197 = vmul.f32 -0.5, %v1082
        %v1198 = vadd.f32 %v1197, 1.0
        %v1199 = vmul.f32 %v1198, %v1082
        %v1200 = vand.u32 2147483647, %v1082
        %vm1201 = vcmp.lt.f32.partialorder %v1200, 0.0004427343
        %v1202 = vsel %vm1201, %v1199, %v1196
        %v1203 = vadd.f32 %v1083, 1.0
        %v1204 = vlog2.pop %v1203
        %v1205 = vmul.f32 %v1204, 0.6931472
        %v1206 = vmul.f32 -0.5, %v1083
        %v1207 = vadd.f32 %v1206, 1.0
        %v1208 = vmul.f32 %v1207, %v1083
        %v1209 = vand.u32 2147483647, %v1083
        %vm1210 = vcmp.lt.f32.partialorder %v1209, 0.0004427343
        %v1211 = vsel %vm1210, %v1208, %v1205
        %v1212 = vadd.f32 %v1084, 1.0
        %v1213 = vlog2.pop %v1212
        %v1214 = vmul.f32 %v1213, 0.6931472
        %v1215 = vmul.f32 -0.5, %v1084
        %v1216 = vadd.f32 %v1215, 1.0
        %v1217 = vmul.f32 %v1216, %v1084
        %v1218 = vand.u32 2147483647, %v1084
        %vm1219 = vcmp.lt.f32.partialorder %v1218, 0.0004427343
        %v1220 = vsel %vm1219, %v1217, %v1214
        %v1221 = vadd.f32 %v1085, 1.0
        %v1222 = vlog2.pop %v1221
        %v1223 = vmul.f32 %v1222, 0.6931472
        %v1224 = vmul.f32 -0.5, %v1085
        %v1225 = vadd.f32 %v1224, 1.0
        %v1226 = vmul.f32 %v1225, %v1085
        %v1227 = vand.u32 2147483647, %v1085
        %vm1228 = vcmp.lt.f32.partialorder %v1227, 0.0004427343
        %v1229 = vsel %vm1228, %v1226, %v1223
        %v1230 = vadd.f32 %v1086, 1.0
        %v1231 = vlog2.pop %v1230
        %v1232 = vmul.f32 %v1231, 0.6931472
        %v1233 = vmul.f32 -0.5, %v1086
        %v1234 = vadd.f32 %v1233, 1.0
        %v1235 = vmul.f32 %v1234, %v1086
        %v1236 = vand.u32 2147483647, %v1086
        %vm1237 = vcmp.lt.f32.partialorder %v1236, 0.0004427343
        %v1238 = vsel %vm1237, %v1235, %v1232
        %v1239 = vadd.f32 %v1087, 1.0
        %v1240 = vlog2.pop %v1239
        %v1241 = vmul.f32 %v1240, 0.6931472
        %v1242 = vmul.f32 -0.5, %v1087
        %v1243 = vadd.f32 %v1242, 1.0
        %v1244 = vmul.f32 %v1243, %v1087
        %v1245 = vand.u32 2147483647, %v1087
        %vm1246 = vcmp.lt.f32.partialorder %v1245, 0.0004427343
        %v1247 = vsel %vm1246, %v1244, %v1241
        %v1248 = vadd.f32 %v1088, 1.0
        %v1249 = vlog2.pop %v1248
        %v1250 = vmul.f32 %v1249, 0.6931472
        %v1251 = vmul.f32 -0.5, %v1088
        %v1252 = vadd.f32 %v1251, 1.0
        %v1253 = vmul.f32 %v1252, %v1088
        %v1254 = vand.u32 2147483647, %v1088
        %vm1255 = vcmp.lt.f32.partialorder %v1254, 0.0004427343
        %v1256 = vsel %vm1255, %v1253, %v1250
        %v1257 = vadd.f32 %v1089, 1.0
        %v1258 = vlog2.pop %v1257
        %v1259 = vmul.f32 %v1258, 0.6931472
        %v1260 = vmul.f32 -0.5, %v1089
        %v1261 = vadd.f32 %v1260, 1.0
        %v1262 = vmul.f32 %v1261, %v1089
        %v1263 = vand.u32 2147483647, %v1089
        %vm1264 = vcmp.lt.f32.partialorder %v1263, 0.0004427343
        %v1265 = vsel %vm1264, %v1262, %v1259
        %v1266 = vadd.f32 %v1090, 1.0
        %v1267 = vlog2.pop %v1266
        %v1268 = vmul.f32 %v1267, 0.6931472
        %v1269 = vmul.f32 -0.5, %v1090
        %v1270 = vadd.f32 %v1269, 1.0
        %v1271 = vmul.f32 %v1270, %v1090
        %v1272 = vand.u32 2147483647, %v1090
        %vm1273 = vcmp.lt.f32.partialorder %v1272, 0.0004427343
        %v1274 = vsel %vm1273, %v1271, %v1268
        %v1275 = vadd.f32 %v1091, 1.0
        %v1276 = vlog2.pop %v1275
        %v1277 = vmul.f32 %v1276, 0.6931472
        %v1278 = vmul.f32 -0.5, %v1091
        %v1279 = vadd.f32 %v1278, 1.0
        %v1280 = vmul.f32 %v1279, %v1091
        %v1281 = vand.u32 2147483647, %v1091
        %vm1282 = vcmp.lt.f32.partialorder %v1281, 0.0004427343
        %v1283 = vsel %vm1282, %v1280, %v1277
        %v1284 = vadd.f32 %v1092, 1.0
        %v1285 = vlog2.pop %v1284
        %v1286 = vmul.f32 %v1285, 0.6931472
        %v1287 = vmul.f32 -0.5, %v1092
        %v1288 = vadd.f32 %v1287, 1.0
        %v1289 = vmul.f32 %v1288, %v1092
        %v1290 = vand.u32 2147483647, %v1092
        %vm1291 = vcmp.lt.f32.partialorder %v1290, 0.0004427343
        %v1292 = vsel %vm1291, %v1289, %v1286
        %v1293 = vadd.f32 %v1093, 1.0
        %v1294 = vlog2.pop %v1293
        %v1295 = vmul.f32 %v1294, 0.6931472
        %v1296 = vmul.f32 -0.5, %v1093
        %v1297 = vadd.f32 %v1296, 1.0
        %v1298 = vmul.f32 %v1297, %v1093
        %v1299 = vand.u32 2147483647, %v1093
        %vm1300 = vcmp.lt.f32.partialorder %v1299, 0.0004427343
        %v1301 = vsel %vm1300, %v1298, %v1295
        %v1302 = vadd.f32 %v1094, 1.0
        %v1303 = vlog2.pop %v1302
        %v1304 = vmul.f32 %v1303, 0.6931472
        %v1305 = vmul.f32 -0.5, %v1094
        %v1306 = vadd.f32 %v1305, 1.0
        %v1307 = vmul.f32 %v1306, %v1094
        %v1308 = vand.u32 2147483647, %v1094
        %vm1309 = vcmp.lt.f32.partialorder %v1308, 0.0004427343
        %v1310 = vsel %vm1309, %v1307, %v1304
        %v1311 = vadd.f32 %v1095, 1.0
        %v1312 = vlog2.pop %v1311
        %v1313 = vmul.f32 %v1312, 0.6931472
        %v1314 = vmul.f32 -0.5, %v1095
        %v1315 = vadd.f32 %v1314, 1.0
        %v1316 = vmul.f32 %v1315, %v1095
        %v1317 = vand.u32 2147483647, %v1095
        %vm1318 = vcmp.lt.f32.partialorder %v1317, 0.0004427343
        %v1319 = vsel %vm1318, %v1316, %v1313
        %v1320 = vadd.f32 %v1096, 1.0
        %v1321 = vlog2.pop %v1320
        %v1322 = vmul.f32 %v1321, 0.6931472
        %v1323 = vmul.f32 -0.5, %v1096
        %v1324 = vadd.f32 %v1323, 1.0
        %v1325 = vmul.f32 %v1324, %v1096
        %v1326 = vand.u32 2147483647, %v1096
        %vm1327 = vcmp.lt.f32.partialorder %v1326, 0.0004427343
        %v1328 = vsel %vm1327, %v1325, %v1322
        %v1329 = vadd.f32 %v1097, 1.0
        %v1330 = vlog2.pop %v1329
        %v1331 = vmul.f32 %v1330, 0.6931472
        %v1332 = vmul.f32 -0.5, %v1097
        %v1333 = vadd.f32 %v1332, 1.0
        %v1334 = vmul.f32 %v1333, %v1097
        %v1335 = vand.u32 2147483647, %v1097
        %vm1336 = vcmp.lt.f32.partialorder %v1335, 0.0004427343
        %v1337 = vsel %vm1336, %v1334, %v1331
        %v1338 = vadd.f32 %v1098, 1.0
        %v1339 = vlog2.pop %v1338
        %v1340 = vmul.f32 %v1339, 0.6931472
        %v1341 = vmul.f32 -0.5, %v1098
        %v1342 = vadd.f32 %v1341, 1.0
        %v1343 = vmul.f32 %v1342, %v1098
        %v1344 = vand.u32 2147483647, %v1098
        %vm1345 = vcmp.lt.f32.partialorder %v1344, 0.0004427343
        %v1346 = vsel %vm1345, %v1343, %v1340
        %v1347 = vadd.f32 %v1099, 1.0
        %v1348 = vlog2.pop %v1347
        %v1349 = vmul.f32 %v1348, 0.6931472
        %v1350 = vmul.f32 -0.5, %v1099
        %v1351 = vadd.f32 %v1350, 1.0
        %v1352 = vmul.f32 %v1351, %v1099
        %v1353 = vand.u32 2147483647, %v1099
        %vm1354 = vcmp.lt.f32.partialorder %v1353, 0.0004427343
        %v1355 = vsel %vm1354, %v1352, %v1349
        %v1356 = vadd.f32 %v1100, 1.0
        %v1357 = vlog2.pop %v1356
        %v1358 = vmul.f32 %v1357, 0.6931472
        %v1359 = vmul.f32 -0.5, %v1100
        %v1360 = vadd.f32 %v1359, 1.0
        %v1361 = vmul.f32 %v1360, %v1100
        %v1362 = vand.u32 2147483647, %v1100
        %vm1363 = vcmp.lt.f32.partialorder %v1362, 0.0004427343
        %v1364 = vsel %vm1363, %v1361, %v1358
        %v1365 = vadd.f32 %v1101, 1.0
        %v1366 = vlog2.pop %v1365
        %v1367 = vmul.f32 %v1366, 0.6931472
        %v1368 = vmul.f32 -0.5, %v1101
        %v1369 = vadd.f32 %v1368, 1.0
        %v1370 = vmul.f32 %v1369, %v1101
        %v1371 = vand.u32 2147483647, %v1101
        %vm1372 = vcmp.lt.f32.partialorder %v1371, 0.0004427343
        %v1373 = vsel %vm1372, %v1370, %v1367
        %v1374 = vadd.f32 %v1102, 1.0
        %v1375 = vlog2.pop %v1374
        %v1376 = vmul.f32 %v1375, 0.6931472
        %v1377 = vmul.f32 -0.5, %v1102
        %v1378 = vadd.f32 %v1377, 1.0
        %v1379 = vmul.f32 %v1378, %v1102
        %v1380 = vand.u32 2147483647, %v1102
        %vm1381 = vcmp.lt.f32.partialorder %v1380, 0.0004427343
        %v1382 = vsel %vm1381, %v1379, %v1376
        %v1383 = vadd.f32 %v1103, 1.0
        %v1384 = vlog2.pop %v1383
        %v1385 = vmul.f32 %v1384, 0.6931472
        %v1386 = vmul.f32 -0.5, %v1103
        %v1387 = vadd.f32 %v1386, 1.0
        %v1388 = vmul.f32 %v1387, %v1103
        %v1389 = vand.u32 2147483647, %v1103
        %vm1390 = vcmp.lt.f32.partialorder %v1389, 0.0004427343
        %v1391 = vsel %vm1390, %v1388, %v1385
        %v1424 = vrot.slane %v1148, 7
        %vm1425 = vcmask 1041409
        %v1426 = vsel %vm1425, %v1424, %v1112
        %v1427 = vrot.slane %v1184, 6
        %vm1428 = vcmask 1042434
        %v1429 = vsel %vm1428, %v1427, %v1426
        %v1430 = vrot.slane %v1220, 5
        %vm1431 = vcmask 1043459
        %v1432 = vsel %vm1431, %v1430, %v1429
        %v1433 = vrot.slane %v1256, 4
        %vm1434 = vcmask 1044484
        %v1435 = vsel %vm1434, %v1433, %v1432
        %v1436 = vrot.slane %v1292, 3
        %vm1437 = vcmask 1045509
        %v1438 = vsel %vm1437, %v1436, %v1435
        %v1439 = vrot.slane %v1328, 2
        %vm1440 = vcmask 1046534
        %v1441 = vsel %vm1440, %v1439, %v1438
        %v1442 = vrot.slane %v1364, 1
        %vm1443 = vcmask 1047559
        %v1444 = vsel %vm1443, %v1442, %v1441
        %v1445 = vrot.slane %v1157, 7
        %v1446 = vsel %vm1425, %v1445, %v1121
        %v1447 = vrot.slane %v1193, 6
        %v1448 = vsel %vm1428, %v1447, %v1446
        %v1449 = vrot.slane %v1229, 5
        %v1450 = vsel %vm1431, %v1449, %v1448
        %v1451 = vrot.slane %v1265, 4
        %v1452 = vsel %vm1434, %v1451, %v1450
        %v1453 = vrot.slane %v1301, 3
        %v1454 = vsel %vm1437, %v1453, %v1452
        %v1455 = vrot.slane %v1337, 2
        %v1456 = vsel %vm1440, %v1455, %v1454
        %v1457 = vrot.slane %v1373, 1
        %v1458 = vsel %vm1443, %v1457, %v1456
        %v1459 = vrot.slane %v1166, 7
        %v1460 = vsel %vm1425, %v1459, %v1130
        %v1461 = vrot.slane %v1202, 6
        %v1462 = vsel %vm1428, %v1461, %v1460
        %v1463 = vrot.slane %v1238, 5
        %v1464 = vsel %vm1431, %v1463, %v1462
        %v1465 = vrot.slane %v1274, 4
        %v1466 = vsel %vm1434, %v1465, %v1464
        %v1467 = vrot.slane %v1310, 3
        %v1468 = vsel %vm1437, %v1467, %v1466
        %v1469 = vrot.slane %v1346, 2
        %v1470 = vsel %vm1440, %v1469, %v1468
        %v1471 = vrot.slane %v1382, 1
        %v1472 = vsel %vm1443, %v1471, %v1470
        %v1473 = vrot.slane %v1175, 7
        %v1474 = vsel %vm1425, %v1473, %v1139
        %v1475 = vrot.slane %v1211, 6
        %v1476 = vsel %vm1428, %v1475, %v1474
        %v1477 = vrot.slane %v1247, 5
        %v1478 = vsel %vm1431, %v1477, %v1476
        %v1479 = vrot.slane %v1283, 4
        %v1480 = vsel %vm1434, %v1479, %v1478
        %v1481 = vrot.slane %v1319, 3
        %v1482 = vsel %vm1437, %v1481, %v1480
        %v1483 = vrot.slane %v1355, 2
        %v1484 = vsel %vm1440, %v1483, %v1482
        %v1485 = vrot.slane %v1391, 1
        %v1486 = vsel %vm1443, %v1485, %v1484
        %s1491 = smul.u32 0, 4
        %s1492 = smul.addr %s1491, 8
        %s1493 = scalar_lea.vmem %s275, %s1492 [#allocation5]
        %1494 = vst [vmem:[%s1493] sm:$0xff] %v1444
        %1495 = vst [vmem:[%s1493 + $0x8] sm:$0xff] %v1458
        %1496 = vst [vmem:[%s1493 + $0x10] sm:$0xff] %v1472
        %1497 = vst [vmem:[%s1493 + $0x18] sm:$0xff] %v1486
        %s1498 = sand.u32 %s147, 1
        %s1499 = scalar_lea.sflag [#allocation4], %s1498
        %s1500 = sand.u32 %s147, 1
        %s1501 = smul.addr %s1500, 32
        %s1502 = scalar_lea.vmem [#allocation5], %s1501
        // Predicated region
        $region41: #{tpu_custom_call.1} parent=35 // pred_check
          %p1503 = pneg %p157
        $region42: #{tpu_custom_call.1} parent=35 // pred_check_branch
          %1505 = sbr.rel (%p1503) target = $region44
        $region43: #{tpu_custom_call.1} parent=35 // pred_region
          %s1506 = smul.u32 4, %s26
          %s1508 = ssub.s32 512, 512
          %1509 = vsyncadd %s1499, %s1508
          %s1510 = smul.addr %s25, 8
          %s1511 = sadd.s32 %s1506, %s1510
          %s1512 = smul.addr %s1511, 128
          %s1513 = scalar_lea.hbm %s4, %s1512
          %s1515 = sshll.u32 %s1502, 4
          %s1516 = int_to_ptr.vmem [resolvable:$true] %s1515
          %1518 = dma.vmem_to_hbm [thread:$0]  %s1516, 512, %s1513, %s1499
        $region44: #{tpu_custom_call.1} parent=35 // pred_fallthru
          _
      $region36: #{tpu_custom_call.1} parent=5 // pred_fallthru
        _
      %p1519 = scmp.le.s32.totalorder 2, %s16
      // Predicated region
      $region45: #{tpu_custom_call.1} parent=5 // pred_check
        %p1520 = pneg %p1519
      $region46: #{tpu_custom_call.1} parent=5 // pred_check_branch
        %1522 = sbr.rel (%p1520) target = $region48
      $region47: #{tpu_custom_call.1} parent=5 // pred_region
        %s1523 = ssub.s32 %s16, 2
        // Predicated region
        $region49: #{tpu_custom_call.1} parent=47 // pred_check
          %p1524 = pneg %p163
        $region50: #{tpu_custom_call.1} parent=47 // pred_check_branch
          %1526 = sbr.rel (%p1524) target = $region52
        $region51: #{tpu_custom_call.1} parent=47 // pred_region
          %s1527 = sand.u32 %s148, 1
          %s1528 = scalar_lea.sflag [#allocation4], %s1527
          %s1529 = sand.u32 %s148, 1
          %s1530 = smul.addr %s1529, 32
          %s1531 = scalar_lea.vmem [#allocation5], %s1530
          %1532 = dma.done %s1528, 512
        $region52: #{tpu_custom_call.1} parent=47 // pred_fallthru
          _
      $region48: #{tpu_custom_call.1} parent=5 // pred_fallthru
        _
    $region6: #{tpu_custom_call.1} parent=1 // loop_footer
      %s20 = sadd.s32 1, %s16
    $region7: #{tpu_custom_call.1} parent=1 // loop_footer_branch
      %15 = sbr.rel target = $region3
    $region8: #{tpu_custom_call.1} parent=1 // loop_exit
      _
    %1533 = vsyncpa [#allocation3], 1
    %s1534 = scalar_lea.sflag [#allocation3], 1
    %1535 = vsyncpa %s1534, 1
    %1536 = vsyncpa [#allocation4], 1
    %s1537 = scalar_lea.sflag [#allocation4], 1
    %1538 = vsyncpa %s1537, 1

</llo_original>
